<compile_context>
chip_gen: v5e
topology: v5e:2x2
jax: 0.10.0
libtpu: 0.0.40
codegen_flags: <defaults>
</compile_context>

<pallas_src>
import functools
import math

import jax
import jax.numpy as jnp
from jax.experimental import pallas as pl
from jax.experimental.pallas import tpu as pltpu


def _token_ce_kernel(logits_ref, targets_ref, partials_ref, *,
                     padding_index, n_valid):
    """One grid step: partial (sum, count) of token cross-entropy."""
    i = pl.program_id(0)
    tile_n = logits_ref.shape[0]

    # Stream native dtype from HBM; cast to f32 on-chip only.
    logits = logits_ref[...].astype(jnp.float32)           # (TN, V)
    tgt = targets_ref[...]                                  # (TN, 1) int32

    # Numerically stable logsumexp over the vocab (lane) axis.
    m = jnp.max(logits, axis=-1, keepdims=True)
    lse = m + jnp.log(jnp.sum(jnp.exp(logits - m), axis=-1, keepdims=True))

    # Target logit via one-hot compare (no dynamic gather on TPU).
    col = jax.lax.broadcasted_iota(jnp.int32, logits.shape, 1)
    tgt_logit = jnp.sum(jnp.where(col == tgt, logits, 0.0),
                        axis=-1, keepdims=True)

    # Valid token: real row (handles ragged last block) and not ignore_index.
    row = jax.lax.broadcasted_iota(jnp.int32, tgt.shape, 0)
    valid = jnp.logical_and(i * tile_n + row < n_valid, tgt != padding_index)

    tok_loss = jnp.where(valid, lse - tgt_logit, 0.0)       # select: nan-safe
    block_sum = jnp.sum(tok_loss)
    block_cnt = jnp.sum(jnp.where(valid, 1.0, 0.0))

    # Write the two partials into an aligned (1, 8, 128) tile:
    #   sublane 0 -> partial sum, sublane 1 -> partial count, rest zeros.
    sub = jax.lax.broadcasted_iota(jnp.int32, partials_ref.shape, 1)
    partials_ref[...] = jnp.where(sub == 0, block_sum,
                                  jnp.where(sub == 1, block_cnt, 0.0))


def _auto_tile_n(n_tokens, vocab, itemsize):
    """Row tile: ~2 MiB of logits per pipeline buffer, clamped to [8, 1024]."""
    budget = 2 << 20
    t = budget // max(1, vocab * itemsize)
    t = max(8, min(1024, (t // 8) * 8))
    n_pad8 = ((n_tokens + 7) // 8) * 8
    return max(8, min(t, n_pad8))


@functools.partial(jax.jit, static_argnames=("padding_index", "tile_n"))
def token_cross_entropy_loss(src, tgt, padding_index, tile_n=None):
    """src: (..., V) float logits; tgt: (...) int targets."""
    *lead, V = src.shape
    N = math.prod(lead)

    logits = src.reshape(N, V)                    # native dtype — no upcast
    targets = tgt.reshape(N, 1).astype(jnp.int32)

    if tile_n is None:
        tile_n = _auto_tile_n(N, V, jnp.dtype(src.dtype).itemsize)
    grid_n = -(-N // tile_n)                      # cdiv; ragged block is masked

    cost = pl.CostEstimate(
        flops=6 * N * V,
        transcendentals=N * V,
        bytes_accessed=(N * V * jnp.dtype(src.dtype).itemsize
                        + N * 4 + grid_n * 8 * 128 * 4),
    )

    kernel = functools.partial(_token_ce_kernel,
                               padding_index=int(padding_index),
                               n_valid=N)

    partials = pl.pallas_call(
        kernel,
        out_shape=jax.ShapeDtypeStruct((grid_n, 8, 128), jnp.float32),
        grid_spec=pltpu.PrefetchScalarGridSpec(
            num_scalar_prefetch=0,
            grid=(grid_n,),
            in_specs=[
                pl.BlockSpec((tile_n, V), lambda i: (i, 0)),
                pl.BlockSpec((tile_n, 1), lambda i: (i, 0)),
            ],
            out_specs=pl.BlockSpec((1, 8, 128), lambda i: (i, 0, 0)),
        ),
        compiler_params=pltpu.CompilerParams(
            dimension_semantics=("parallel",),     # lets v7x split over 2 TCs
            vmem_limit_bytes=32 * 1024 * 1024,     # safe on v5e/v6e/v7x
        ),
        cost_estimate=cost,
    )(logits, targets)

    total = jnp.sum(partials[:, 0, 0])
    count = jnp.sum(partials[:, 1, 0])
    # Guard the all-ignored case instead of emitting inf/nan.
    return jnp.where(count > 0, total / jnp.maximum(count, 1.0),
                     jnp.float32(0.0))


def _reference_loss(src, tgt, padding_index):
    V = src.shape[-1]
    logits = src.reshape(-1, V).astype(jnp.float32)
    t = tgt.reshape(-1).astype(jnp.int32)
    mask = t != padding_index
    lse = jax.scipy.special.logsumexp(logits, axis=-1)
    tgt_logit = jnp.take_along_axis(logits, t[:, None], axis=-1)[:, 0]
    per_tok = lse - tgt_logit
    return jnp.sum(jnp.where(mask, per_tok, 0.0)) / jnp.sum(mask)


if __name__ == "__main__":
    B, T, V = 2, 8, 32
    padding_index = 0
    key = jax.random.PRNGKey(0)
    k_src, k_tgt = jax.random.split(key)
    src = jax.random.normal(k_src, (B, T, V), dtype=jnp.float32)
    tgt = jax.random.randint(k_tgt, (B, T), 1, V, dtype=jnp.int32)
    tgt = tgt.at[1, 5:].set(padding_index)   # some padded (ignored) tokens

    loss = token_cross_entropy_loss(src, tgt, padding_index)
    loss = jax.block_until_ready(loss)

    ref = _reference_loss(src, tgt, padding_index)
    assert jnp.allclose(loss, ref, rtol=1e-5, atol=1e-5), (loss, ref)
    print("KERNEL_OK")
</pallas_src>

<mosaic_0001>
module attributes {stable_mosaic.version = 11 : i64} {
  func.func @_token_ce_kernel(%arg0: i32, %arg1: memref<16x32xf32, #tpu.memory_space<vmem>>, %arg2: memref<16x1xi32, #tpu.memory_space<vmem>>, %arg3: memref<1x8x128xf32, #tpu.memory_space<vmem>>) attributes {dimension_semantics = [#tpu.dimension_semantics<parallel>], iteration_bounds = array<i64: 1>, scalar_prefetch = 0 : i64, scratch_operands = 0 : i64, tpu.core_type = #tpu.core_type<tc>, window_params = [{transform_indices = @transform_0, window_bounds = array<i64: 16, 32>}, {transform_indices = @transform_1, window_bounds = array<i64: 16, 1>}, {transform_indices = @transform_2, window_bounds = array<i64: 1, 8, 128>}]} {
    %c0 = arith.constant 0 : index
    %c0_0 = arith.constant 0 : index
    %0 = vector.load %arg1[%c0, %c0_0] : memref<16x32xf32, #tpu.memory_space<vmem>>, vector<16x32xf32>
    %c0_1 = arith.constant 0 : index
    %c0_2 = arith.constant 0 : index
    %1 = vector.load %arg2[%c0_1, %c0_2] : memref<16x1xi32, #tpu.memory_space<vmem>>, vector<16x1xi32>
    %cst = arith.constant dense<0xFF800000> : vector<16xf32>
    %2 = vector.multi_reduction <maximumf>, %0, %cst [1] : vector<16x32xf32> to vector<16xf32>
    %3 = vector.shape_cast %2 : vector<16xf32> to vector<16x1xf32>
    %4 = vector.broadcast %3 : vector<16x1xf32> to vector<16x32xf32>
    %5 = arith.subf %0, %4 : vector<16x32xf32>
    %6 = math.exp %5 : vector<16x32xf32>
    %cst_3 = arith.constant dense<0.000000e+00> : vector<16xf32>
    %7 = vector.multi_reduction <add>, %6, %cst_3 [1] : vector<16x32xf32> to vector<16xf32>
    %8 = vector.shape_cast %7 : vector<16xf32> to vector<16x1xf32>
    %9 = math.log %8 : vector<16x1xf32>
    %10 = arith.addf %3, %9 : vector<16x1xf32>
    %11 = tpu.iota {dimensions = array<i32: 1>} : vector<16x32xi32>
    %12 = vector.broadcast %1 : vector<16x1xi32> to vector<16x32xi32>
    %13 = arith.cmpi eq, %11, %12 : vector<16x32xi32>
    %cst_4 = arith.constant 0.000000e+00 : f32
    %14 = vector.broadcast %cst_4 : f32 to vector<16x32xf32>
    %15 = arith.select %13, %0, %14 : vector<16x32xi1>, vector<16x32xf32>
    %cst_5 = arith.constant dense<0.000000e+00> : vector<16xf32>
    %16 = vector.multi_reduction <add>, %15, %cst_5 [1] : vector<16x32xf32> to vector<16xf32>
    %17 = vector.shape_cast %16 : vector<16xf32> to vector<16x1xf32>
    %18 = tpu.iota {dimensions = array<i32: 0>} : vector<16x1xi32>
    %c16_i32 = arith.constant 16 : i32
    %19 = arith.muli %arg0, %c16_i32 : i32
    %20 = vector.broadcast %19 : i32 to vector<16x1xi32>
    %21 = arith.addi %20, %18 : vector<16x1xi32>
    %c16_i32_6 = arith.constant 16 : i32
    %22 = vector.broadcast %c16_i32_6 : i32 to vector<16x1xi32>
    %23 = arith.cmpi slt, %21, %22 : vector<16x1xi32>
    %c0_i32 = arith.constant 0 : i32
    %24 = vector.broadcast %c0_i32 : i32 to vector<16x1xi32>
    %25 = arith.cmpi ne, %1, %24 : vector<16x1xi32>
    %26 = arith.andi %23, %25 : vector<16x1xi1>
    %27 = arith.subf %10, %17 : vector<16x1xf32>
    %cst_7 = arith.constant 0.000000e+00 : f32
    %28 = vector.broadcast %cst_7 : f32 to vector<16x1xf32>
    %29 = arith.select %26, %27, %28 : vector<16x1xi1>, vector<16x1xf32>
    %30 = vector.shape_cast %29 : vector<16x1xf32> to vector<1x16x1xf32>
    %cst_8 = arith.constant dense<0.000000e+00> : vector<1xf32>
    %31 = vector.multi_reduction <add>, %30, %cst_8 [1, 2] : vector<1x16x1xf32> to vector<1xf32>
    %32 = vector.shape_cast %31 : vector<1xf32> to vector<1x1x1xf32>
    %33 = vector.extract %32[0, 0, 0] : f32 from vector<1x1x1xf32>
    %cst_9 = arith.constant 1.000000e+00 : f32
    %cst_10 = arith.constant 0.000000e+00 : f32
    %34 = vector.broadcast %cst_9 : f32 to vector<16x1xf32>
    %35 = vector.broadcast %cst_10 : f32 to vector<16x1xf32>
    %36 = arith.select %26, %34, %35 : vector<16x1xi1>, vector<16x1xf32>
    %37 = vector.shape_cast %36 : vector<16x1xf32> to vector<1x16x1xf32>
    %cst_11 = arith.constant dense<0.000000e+00> : vector<1xf32>
    %38 = vector.multi_reduction <add>, %37, %cst_11 [1, 2] : vector<1x16x1xf32> to vector<1xf32>
    %39 = vector.shape_cast %38 : vector<1xf32> to vector<1x1x1xf32>
    %40 = vector.extract %39[0, 0, 0] : f32 from vector<1x1x1xf32>
    %41 = tpu.iota {dimensions = array<i32: 1>} : vector<1x8x128xi32>
    %c0_i32_12 = arith.constant 0 : i32
    %42 = vector.broadcast %c0_i32_12 : i32 to vector<1x8x128xi32>
    %43 = arith.cmpi eq, %41, %42 : vector<1x8x128xi32>
    %c1_i32 = arith.constant 1 : i32
    %44 = vector.broadcast %c1_i32 : i32 to vector<1x8x128xi32>
    %45 = arith.cmpi eq, %41, %44 : vector<1x8x128xi32>
    %cst_13 = arith.constant 0.000000e+00 : f32
    %46 = vector.broadcast %40 : f32 to vector<1x8x128xf32>
    %47 = vector.broadcast %cst_13 : f32 to vector<1x8x128xf32>
    %48 = arith.select %45, %46, %47 : vector<1x8x128xi1>, vector<1x8x128xf32>
    %49 = vector.broadcast %33 : f32 to vector<1x8x128xf32>
    %50 = arith.select %43, %49, %48 : vector<1x8x128xi1>, vector<1x8x128xf32>
    %c0_14 = arith.constant 0 : index
    %c0_15 = arith.constant 0 : index
    %c0_16 = arith.constant 0 : index
    %51 = vector.load %arg3[%c0_14, %c0_15, %c0_16] : memref<1x8x128xf32, #tpu.memory_space<vmem>>, vector<1x8x128xf32>
    tpu.vector_store %arg3[%c0_14, %c0_15, %c0_16], %50 {strides = array<i32>} : memref<1x8x128xf32, #tpu.memory_space<vmem>>, vector<1x8x128xf32>,
    return
  }
  func.func @transform_0(%arg0: i32) -> (i32, i32) {
    %c0_i32 = arith.constant 0 : i32
    %c0_i32_0 = arith.constant 0 : i32
    return %arg0, %c0_i32 : i32, i32
  }
  func.func @transform_1(%arg0: i32) -> (i32, i32) {
    %c0_i32 = arith.constant 0 : i32
    %c0_i32_0 = arith.constant 0 : i32
    return %arg0, %c0_i32 : i32, i32
  }
  func.func @transform_2(%arg0: i32) -> (i32, i32, i32) {
    %c0_i32 = arith.constant 0 : i32
    %c0_i32_0 = arith.constant 0 : i32
    %c0_i32_1 = arith.constant 0 : i32
    return %arg0, %c0_i32, %c0_i32_0 : i32, i32, i32
  }
}

</mosaic_0001>

<llo_original>
// kernel: token_cross_entropy_loss.1
$region0: #{token_cross_entropy_loss.1}
  #allocation0 [shape = 'u32[]', space=smem, size = 0x4, offset = 0x4, fixed_abs, tag = 'smem constant byte address 0x4 - core index']
  #allocation1 [shape = 'u32[72,128]{1,0:T(1,128)}', space=vmem, size = 0x9000, scoped, tag = 'internal scratch']
  %s0 = inlined_call_operand.vmem [shape: f32[16,32], index: 0, kind: input, shape index: {}]
  %s1 = inlined_call_operand.vmem [shape: s32[16,1], index: 1, kind: input, shape index: {}]
  %s2 = inlined_call_operand.vmem [shape: f32[1,8,128], index: 2, kind: output, shape index: {}]
  %s3 = sld [smem:[#allocation0]]
  $region18: #{token_cross_entropy_loss.1} parent=0
    _
  %s5 = ssub.s32 1, %s3
  %s6 = scalar_select 0, %s5, %s3
  // Predicated region
  $region2: #{token_cross_entropy_loss.1} parent=0 // pred_check
    _
  $region3: #{token_cross_entropy_loss.1} parent=0 // pred_check_branch
    %8 = sbr.rel (0) target = $region5
  $region4: #{token_cross_entropy_loss.1} parent=0 // pred_region
    _
  $region5: #{token_cross_entropy_loss.1} parent=0 // pred_fallthru
    _
  // Predicated region
  $region6: #{token_cross_entropy_loss.1} parent=0 // pred_check
    _
  $region7: #{token_cross_entropy_loss.1} parent=0 // pred_check_branch
    %10 = sbr.rel (0) target = $region9
  $region8: #{token_cross_entropy_loss.1} parent=0 // pred_region
    _
  $region9: #{token_cross_entropy_loss.1} parent=0 // pred_fallthru
    _
  %v11 = vld [vmem:[%s0] sm:$0xff]
  %v12 = vld [vmem:[%s0 + $0x8] sm:$0xff]
  %v13 = vld [vmem:[%s1] sm:$0xff]
  %v14 = vld [vmem:[%s1 + $0x8] sm:$0xff]
  %vm15 = vcmask 261120
  %v16 = vsel %vm15, %v11, -inf
  %17 = vmax.xlane.f32.xlu0 %v16
  %v18 = vpop.xlane.xlu0 %17
  %v19 = vsel %vm15, %v12, -inf
  %20 = vmax.xlane.f32.xlu0 %v19
  %v21 = vpop.xlane.xlu0 %20
  %v22 = vsub.f32 %v11, %v18
  %v23 = vsub.f32 %v12, %v21
  %v24 = vmul.f32 %v22, 1.442695
  %v25 = vpow.pop %v24
  %v26 = vmul.f32 %v23, 1.442695
  %v27 = vpow.pop %v26
  %v28 = vsel %vm15, %v25, 0.0
  %29 = vadd.xlane.f32.xlu0 %v28
  %v30 = vpop.xlane.xlu0 %29
  %v31 = vsel %vm15, %v27, 0.0
  %32 = vadd.xlane.f32.xlu0 %v31
  %v33 = vpop.xlane.xlu0 %32
  %v34 = vlog2.pop %v30
  %v35 = vmul.f32 %v34, 0.6931472
  %v36 = vlog2.pop %v33
  %v37 = vmul.f32 %v36, 0.6931472
  %v38 = vadd.f32 %v18, %v35
  %v39 = vadd.f32 %v21, %v37
  %v40 = vlaneseq
  %v41 = vand.u32 %v40, 127
  %42 = vset.pattern.permute.xlu0 0
  %43 = vperm.xlu0 %42, %v13
  %v44 = vpop.permute.xlu0 %43
  %45 = vset.pattern.permute.xlu0 0
  %46 = vperm.xlu0 %45, %v14
  %v47 = vpop.permute.xlu0 %46
  %vm48 = vcmp.eq.s32.totalorder %v41, %v44
  %vm49 = vcmp.eq.s32.totalorder %v41, %v47
  %v50 = vsel %vm48, %v11, 0.0
  %v51 = vsel %vm49, %v12, 0.0
  %v52 = vsel %vm15, %v50, 0.0
  %53 = vadd.xlane.f32.xlu0 %v52
  %v54 = vpop.xlane.xlu0 %53
  %v55 = vsel %vm15, %v51, 0.0
  %56 = vadd.xlane.f32.xlu0 %v55
  %v57 = vpop.xlane.xlu0 %56
  %v58 = vlaneseq
  %v59 = vshrl.u32 %v58, 7
  %v60 = vadd.s32 %v59, 8
  %s61 = smul.u32 0, 16
  %v62 = vstv %s61
  %v63 = vadd.s32 %v62, %v59
  %v64 = vadd.s32 %v62, %v60
  %vm65 = vcmp.lt.s32.totalorder %v63, 16
  %vm66 = vcmp.lt.s32.totalorder %v64, 16
  %vm67 = vcmp.ne.s32.totalorder %v13, 0
  %vm68 = vcmp.ne.s32.totalorder %v14, 0
  %vm69 = vmand %vm65, %vm67
  %vm70 = vmand %vm66, %vm68
  %v71 = vsub.f32 %v38, %v54
  %v72 = vsub.f32 %v39, %v57
  %v73 = vsel %vm69, %v71, 0.0
  %v74 = vsel %vm70, %v72, 0.0
  %vm75 = vcmask 7168
  %v76 = vsel %vm75, %v73, 0.0
  %v77 = vsel %vm75, %v74, 0.0
  %v78 = vadd.f32 %v76, %v77
  %79 = vadd.xlane.f32.xlu0 %v78
  %v80 = vpop.xlane.xlu0 %79
  %v81 = vrot.slane %v80, 4
  %v82 = vadd.f32 %v80, %v81
  %v83 = vrot.slane %v82, 2
  %v84 = vadd.f32 %v82, %v83
  %v85 = vrot.slane %v84, 1
  %v86 = vadd.f32 %v84, %v85
  %s87 = vtos %v86
  %v88 = vsel %vm69, 1.0, 0.0
  %v89 = vsel %vm70, 1.0, 0.0
  %v90 = vsel %vm75, %v88, 0.0
  %v91 = vsel %vm75, %v89, 0.0
  %v92 = vadd.f32 %v90, %v91
  %93 = vadd.xlane.f32.xlu0 %v92
  %v94 = vpop.xlane.xlu0 %93
  %v95 = vrot.slane %v94, 4
  %v96 = vadd.f32 %v94, %v95
  %v97 = vrot.slane %v96, 2
  %v98 = vadd.f32 %v96, %v97
  %v99 = vrot.slane %v98, 1
  %v100 = vadd.f32 %v98, %v99
  %s101 = vtos %v100
  %vm102 = vcmp.eq.s32.totalorder %v59, 0
  %vm103 = vcmp.eq.s32.totalorder %v59, 1
  %v104 = vstv %s101
  %v105 = vsel %vm103, %v104, 0.0
  %v106 = vstv %s87
  %v107 = vsel %vm102, %v106, %v105
  %108 = vst [vmem:[%s2] sm:$0xff] %v107
  // Predicated region
  $region10: #{token_cross_entropy_loss.1} parent=0 // pred_check
    _
  $region11: #{token_cross_entropy_loss.1} parent=0 // pred_check_branch
    %110 = sbr.rel (0) target = $region13
  $region12: #{token_cross_entropy_loss.1} parent=0 // pred_region
    _
  $region13: #{token_cross_entropy_loss.1} parent=0 // pred_fallthru
    _
  // Predicated region
  $region14: #{token_cross_entropy_loss.1} parent=0 // pred_check
    _
  $region15: #{token_cross_entropy_loss.1} parent=0 // pred_check_branch
    %112 = sbr.rel (0) target = $region17
  $region16: #{token_cross_entropy_loss.1} parent=0 // pred_region
    _
  $region17: #{token_cross_entropy_loss.1} parent=0 // pred_fallthru
    _

</llo_original>
